<compile_context>
chip_gen: v5e
topology: v5e:2x2
jax: 0.10.0
libtpu: 0.0.40
codegen_flags: <defaults>
</compile_context>

<pallas_src>
import jax
import jax.numpy as jnp
from jax import lax
from jax.experimental import pallas as pl
from jax.experimental.pallas import tpu as pltpu


def _round_up(x: int, m: int) -> int:
    return ((x + m - 1) // m) * m


def _vmem_capacity_bytes() -> int:
    """Physical VMEM of the local TPU; conservative (v7x-sized) fallback."""
    try:
        return int(pltpu.get_tpu_info().vmem_capacity_bytes)
    except Exception:
        return 64 * 2 ** 20


# --------------------------------------------------------------------------- #
# Kernel
# --------------------------------------------------------------------------- #
def _cat_logreg_kernel(num_ref, idx_ref, w_num_ref, w_cat_ref, bias_ref, out_ref):
    """One batch tile.  Produces transposed probabilities (o_pad, tile_b)."""
    tile_b = num_ref.shape[0]
    e_pad = w_cat_ref.shape[1]
    n_cat = idx_ref.shape[1]

    idx = idx_ref[...]                                               # (tile_b, C) int32
    iota_e = lax.broadcasted_iota(jnp.int32, (tile_b, e_pad), 1)     # lane index

    # Per-sample embedding-row counts (disjoint one-hots summed).  Accumulate the
    # compares in int32 and cast ONCE to the bf16 matmul dtype.  n_cat is tiny ->
    # static unroll.
    onehot = jnp.zeros((tile_b, e_pad), jnp.int32)
    for c in range(n_cat):
        onehot = onehot + (idx[:, c:c + 1] == iota_e).astype(jnp.int32)
    counts = onehot.astype(w_cat_ref.dtype)                          # exact in bf16

    # Transposed logits (o_pad, tile_b): contract both operands over their last
    # (lane) dim, so no transposes are materialized and batch lands on lanes.
    dn = (((1,), (1,)), ((), ()))
    logits = lax.dot_general(w_num_ref[...], num_ref[...], dn,       # f32 MXU
                             preferred_element_type=jnp.float32)
    logits = logits + lax.dot_general(w_cat_ref[...], counts, dn,    # bf16 MXU
                                      preferred_element_type=jnp.float32)
    logits = logits + bias_ref[...]                                  # (o_pad,1) broadcast
    logits = jnp.clip(logits, -50.0, 50.0)
    # Exact sigmoid (EUP exp + divide) - strict parity with torch; cost is hidden
    # under the matmuls.
    out_ref[...] = 1.0 / (1.0 + jnp.exp(-logits))


# --------------------------------------------------------------------------- #
# One-time parameter preparation (hoisted out of the per-call path)
# --------------------------------------------------------------------------- #
def prepare_cat_logreg_params(weight, cat_params, bias, embed_sizes,
                              cat_dtype=jnp.bfloat16):
    """weight: (O, F) torch nn.Linear layout; cat_params: (sum(embed_sizes), O);
    bias: (O,).  Returns padded / cast device arrays plus static metadata."""
    weight = jnp.asarray(weight, jnp.float32)
    cat_params = jnp.asarray(cat_params, jnp.float32)
    bias = jnp.asarray(bias, jnp.float32)

    out_size, num_size = weight.shape
    total_embed = cat_params.shape[0]
    assert cat_params.shape[1] == out_size and bias.shape == (out_size,)

    o_pad = _round_up(max(out_size, 1), 8)            # output rows live on sublanes
    f_pad = _round_up(max(num_size, 1), 128)          # matmul K dims lane-dense
    e_pad = _round_up(max(total_embed, 1), 128)

    w_num = jnp.pad(weight, ((0, o_pad - out_size), (0, f_pad - num_size)))
    w_cat = jnp.pad(cat_params.T,
                    ((0, o_pad - out_size), (0, e_pad - total_embed))).astype(cat_dtype)
    bias_p = jnp.pad(bias, (0, o_pad - out_size)).reshape(o_pad, 1)

    es = jnp.asarray(embed_sizes, jnp.int32)
    embed_idx = jnp.cumsum(es) - es                   # torch: cumsum - sizes

    return dict(w_num=w_num, w_cat=w_cat, bias=bias_p, embed_idx=embed_idx,
                numeric_size=int(num_size), output_size=int(out_size),
                total_embed=int(total_embed))


# --------------------------------------------------------------------------- #
# Forward wrapper
# --------------------------------------------------------------------------- #
def cat_logistic_regression(params, numbers, categories, *, tile_b=None):
    """numbers: (B, F) f32; categories: (B, C) int.  Returns (B, O) probabilities."""
    numbers = jnp.asarray(numbers, jnp.float32)
    categories = jnp.asarray(categories, jnp.int32)

    w_num, w_cat, bias_p = params["w_num"], params["w_cat"], params["bias"]
    o_pad, f_pad = w_num.shape
    e_pad = w_cat.shape[1]
    out_size = params["output_size"]

    B, F = numbers.shape
    C = categories.shape[1]
    assert F == params["numeric_size"]

    # Flat row indices into cat_params.  Out-of-range codes only hit zero-padded
    # rows of w_cat (contribute 0) - the counts construction cannot read OOB.
    cat_idx = categories + params["embed_idx"][None, :]

    # ---- generation-aware tiling & VMEM budget ------------------------------
    vmem_cap = _vmem_capacity_bytes()
    usable_vmem = max(32 * 2 ** 20, vmem_cap - 16 * 2 ** 20)   # Mosaic headroom

    if tile_b is None:                                          # 1024 on 128 MiB chips
        tile_b = 1024 if vmem_cap >= 96 * 2 ** 20 else 512      # 512 on v7x (64 MiB)

    b_pad128 = _round_up(B, 128)
    tile_b = max(128, min(_round_up(tile_b, 128), b_pad128))
    # Keep >=2 grid steps when the batch allows so the "parallel" axis can shard
    # across both v7x TensorCores (no cost on 1-TC v5e/v6e).
    if b_pad128 >= 256 and b_pad128 <= tile_b:
        tile_b = _round_up(b_pad128 // 2, 128)

    itemsz_cat = jnp.dtype(w_cat.dtype).itemsize
    resident = w_num.size * 4 + w_cat.size * itemsz_cat + bias_p.size * 4

    def _tile_bytes(t):
        return (2 * t * f_pad * 4                 # numbers tiles (double-buffered)
                + 2 * t * C * 4                   # categorical-id tiles
                + 2 * o_pad * t * 4               # output tiles
                + t * e_pad * (4 + itemsz_cat)    # onehot + counts intermediates
                + 2 * o_pad * t * 4)              # logits / slack

    while tile_b > 128 and resident + _tile_bytes(tile_b) > usable_vmem:
        tile_b = _round_up(tile_b // 2, 128)

    b_pad = _round_up(B, tile_b)
    grid = (b_pad // tile_b,)

    num_p = jnp.pad(numbers, ((0, b_pad - B), (0, f_pad - F)))
    idx_p = jnp.pad(cat_idx, ((0, b_pad - B), (0, 0)))   # padded rows sliced off below

    vmem_limit = int(min(usable_vmem,
                         max(32 * 2 ** 20, 2 * (resident + _tile_bytes(tile_b)))))

    cost = pl.CostEstimate(
        flops=2 * b_pad * (f_pad + e_pad) * o_pad,
        transcendentals=b_pad * o_pad,
        bytes_accessed=(4 * b_pad * (f_pad + C + o_pad)
                        + w_num.size * 4 + w_cat.size * itemsz_cat),
    )

    out_t = pl.pallas_call(
        _cat_logreg_kernel,
        out_shape=jax.ShapeDtypeStruct((o_pad, b_pad), jnp.float32),
        grid=grid,
        in_specs=[
            pl.BlockSpec((tile_b, f_pad), lambda i: (i, 0)),      # numbers (streamed)
            # C is tiny; a (tile_b, C) int tile is a few KB.  TODO(synk): move to
            # SMEM / repack lane-dense if the number of categorical features grows.
            pl.BlockSpec((tile_b, C), lambda i: (i, 0)),          # categorical codes
            # Whole-array single-buffered VMEM residents (copied once, never refetched).
            pl.BlockSpec(memory_space=pltpu.MemorySpace.VMEM),    # W_num  (f32)
            pl.BlockSpec(memory_space=pltpu.MemorySpace.VMEM),    # W_cat  (bf16)
            pl.BlockSpec(memory_space=pltpu.MemorySpace.VMEM),    # bias   (f32)
        ],
        out_specs=pl.BlockSpec((o_pad, tile_b), lambda i: (0, i)),  # transposed, lane-dense
        compiler_params=pltpu.CompilerParams(
            dimension_semantics=("parallel",),
            vmem_limit_bytes=vmem_limit,
        ),
        cost_estimate=cost,
    )(num_p, idx_p, w_num, w_cat, bias_p)

    return out_t[:out_size, :B].T       # (B, O) probabilities


# --------------------------------------------------------------------------- #
# Demo / self-test
# --------------------------------------------------------------------------- #
if __name__ == "__main__":
    B = 8
    numeric_size = 16
    embed_sizes = (4, 3, 5)              # 3 categorical features, 12 embedding rows
    output_size = 4
    n_cat = len(embed_sizes)
    total_embed = sum(embed_sizes)

    key = jax.random.PRNGKey(0)
    k_num, k_cat, k_w, k_e, k_b = jax.random.split(key, 5)

    numbers = jax.random.normal(k_num, (B, numeric_size), dtype=jnp.float32)
    categories = jnp.stack(
        [jax.random.randint(jax.random.fold_in(k_cat, j), (B,), 0, embed_sizes[j])
         for j in range(n_cat)], axis=1).astype(jnp.int32)

    # The real __init__ zero-initializes; use small random values so compute is exercised.
    weight = 0.1 * jax.random.normal(k_w, (output_size, numeric_size), dtype=jnp.float32)
    cat_params = 0.1 * jax.random.normal(k_e, (total_embed, output_size), dtype=jnp.float32)
    bias = 0.1 * jax.random.normal(k_b, (output_size,), dtype=jnp.float32)

    # One-time weight prep (hoisted out of the per-call path), then forward.
    params = prepare_cat_logreg_params(weight, cat_params, bias, embed_sizes)
    out = cat_logistic_regression(params, numbers, categories)
    out = jax.block_until_ready(out)

    # Pure-JAX reference with the torch-module semantics.
    es_arr = jnp.asarray(embed_sizes, dtype=jnp.int32)
    embed_idx = jnp.cumsum(es_arr) - es_arr
    ref = bias[None, :] + numbers @ weight.T
    ref = ref + cat_params[categories + embed_idx[None, :]].sum(axis=1)
    ref = jax.nn.sigmoid(jnp.clip(ref, -50.0, 50.0))

    assert out.shape == (B, output_size)
    # Sigmoid is exact; the only deviation is the bf16 cat_params (<~1e-3 in the logit).
    assert jnp.allclose(out, ref, atol=2e-3, rtol=2e-3), (out, ref)
    print("KERNEL_OK")
</pallas_src>

<mosaic_0001>
module attributes {stable_mosaic.version = 11 : i64} {
  func.func @_cat_logreg_kernel(%arg0: i32, %arg1: memref<128x128xf32, #tpu.memory_space<vmem>>, %arg2: memref<128x3xi32, #tpu.memory_space<vmem>>, %arg3: memref<8x128xf32, #tpu.memory_space<vmem>>, %arg4: memref<8x128xbf16, #tpu.memory_space<vmem>>, %arg5: memref<8x1xf32, #tpu.memory_space<vmem>>, %arg6: memref<8x128xf32, #tpu.memory_space<vmem>>) attributes {dimension_semantics = [#tpu.dimension_semantics<parallel>], iteration_bounds = array<i64: 1>, scalar_prefetch = 0 : i64, scratch_operands = 0 : i64, tpu.core_type = #tpu.core_type<tc>, window_params = [{transform_indices = @transform_0, window_bounds = array<i64: 128, 128>}, {transform_indices = @transform_1, window_bounds = array<i64: 128, 3>}, {pipeline_mode = #tpu.pipeline_mode<synchronous>, transform_indices = @transform_2, window_bounds = array<i64: 8, 128>}, {pipeline_mode = #tpu.pipeline_mode<synchronous>, transform_indices = @transform_3, window_bounds = array<i64: 8, 128>}, {pipeline_mode = #tpu.pipeline_mode<synchronous>, transform_indices = @transform_4, window_bounds = array<i64: 8, 1>}, {transform_indices = @transform_5, window_bounds = array<i64: 8, 128>}]} {
    %c0 = arith.constant 0 : index
    %c0_0 = arith.constant 0 : index
    %0 = vector.load %arg2[%c0, %c0_0] : memref<128x3xi32, #tpu.memory_space<vmem>>, vector<128x3xi32>
    %1 = tpu.iota {dimensions = array<i32: 1>} : vector<128x128xi32>
    %c0_i32 = arith.constant 0 : i32
    %2 = vector.broadcast %c0_i32 : i32 to vector<128x128xi32>
    %3 = vector.extract_strided_slice %0 {offsets = [0, 0], sizes = [128, 1], strides = [1, 1]} : vector<128x3xi32> to vector<128x1xi32>
    %4 = vector.broadcast %3 : vector<128x1xi32> to vector<128x128xi32>
    %5 = arith.cmpi eq, %4, %1 : vector<128x128xi32>
    %6 = arith.extui %5 : vector<128x128xi1> to vector<128x128xi32>
    %7 = arith.addi %2, %6 : vector<128x128xi32>
    %8 = vector.extract_strided_slice %0 {offsets = [0, 1], sizes = [128, 1], strides = [1, 1]} : vector<128x3xi32> to vector<128x1xi32>
    %9 = vector.broadcast %8 : vector<128x1xi32> to vector<128x128xi32>
    %10 = arith.cmpi eq, %9, %1 : vector<128x128xi32>
    %11 = arith.extui %10 : vector<128x128xi1> to vector<128x128xi32>
    %12 = arith.addi %7, %11 : vector<128x128xi32>
    %13 = vector.extract_strided_slice %0 {offsets = [0, 2], sizes = [128, 1], strides = [1, 1]} : vector<128x3xi32> to vector<128x1xi32>
    %14 = vector.broadcast %13 : vector<128x1xi32> to vector<128x128xi32>
    %15 = arith.cmpi eq, %14, %1 : vector<128x128xi32>
    %16 = arith.extui %15 : vector<128x128xi1> to vector<128x128xi32>
    %17 = arith.addi %12, %16 : vector<128x128xi32>
    %18 = arith.sitofp %17 : vector<128x128xi32> to vector<128x128xbf16>
    %c0_1 = arith.constant 0 : index
    %c0_2 = arith.constant 0 : index
    %19 = vector.load %arg3[%c0_1, %c0_2] : memref<8x128xf32, #tpu.memory_space<vmem>>, vector<8x128xf32>
    %c0_3 = arith.constant 0 : index
    %c0_4 = arith.constant 0 : index
    %20 = vector.load %arg1[%c0_3, %c0_4] : memref<128x128xf32, #tpu.memory_space<vmem>>, vector<128x128xf32>
    %cst = arith.constant dense<0.000000e+00> : vector<8x128xf32>
    %21 = tpu.matmul %19, %20, %cst {dimension_numbers = #tpu.dot_dimension_numbers<[1], [1], [0], [0], [0, 0, 1, 0], [], []>} : vector<8x128xf32>, vector<128x128xf32>, vector<8x128xf32> -> vector<8x128xf32>
    %c0_5 = arith.constant 0 : index
    %c0_6 = arith.constant 0 : index
    %22 = vector.load %arg4[%c0_5, %c0_6] : memref<8x128xbf16, #tpu.memory_space<vmem>>, vector<8x128xbf16>
    %cst_7 = arith.constant dense<0.000000e+00> : vector<8x128xf32>
    %23 = tpu.matmul %22, %18, %cst_7 {dimension_numbers = #tpu.dot_dimension_numbers<[1], [1], [0], [0], [0, 0, 1, 0], [], []>} : vector<8x128xbf16>, vector<128x128xbf16>, vector<8x128xf32> -> vector<8x128xf32>
    %24 = arith.addf %21, %23 : vector<8x128xf32>
    %c0_8 = arith.constant 0 : index
    %c0_9 = arith.constant 0 : index
    %25 = vector.load %arg5[%c0_8, %c0_9] : memref<8x1xf32, #tpu.memory_space<vmem>>, vector<8x1xf32>
    %26 = vector.broadcast %25 : vector<8x1xf32> to vector<8x128xf32>
    %27 = arith.addf %24, %26 : vector<8x128xf32>
    %cst_10 = arith.constant -5.000000e+01 : f32
    %cst_11 = arith.constant 5.000000e+01 : f32
    %28 = vector.broadcast %cst_10 : f32 to vector<8x128xf32>
    %29 = arith.maximumf %28, %27 : vector<8x128xf32>
    %30 = vector.broadcast %cst_11 : f32 to vector<8x128xf32>
    %31 = arith.minimumf %30, %29 : vector<8x128xf32>
    %cst_12 = arith.constant 0.000000e+00 : f32
    %32 = vector.broadcast %cst_12 : f32 to vector<8x128xf32>
    %33 = arith.subf %32, %31 : vector<8x128xf32>
    %34 = math.exp %33 : vector<8x128xf32>
    %cst_13 = arith.constant 1.000000e+00 : f32
    %35 = vector.broadcast %cst_13 : f32 to vector<8x128xf32>
    %36 = arith.addf %35, %34 : vector<8x128xf32>
    %cst_14 = arith.constant 1.000000e+00 : f32
    %37 = vector.broadcast %cst_14 : f32 to vector<8x128xf32>
    %38 = arith.divf %37, %36 : vector<8x128xf32>
    %c0_15 = arith.constant 0 : index
    %c0_16 = arith.constant 0 : index
    %39 = vector.load %arg6[%c0_15, %c0_16] : memref<8x128xf32, #tpu.memory_space<vmem>>, vector<8x128xf32>
    tpu.vector_store %arg6[%c0_15, %c0_16], %38 {strides = array<i32>} : memref<8x128xf32, #tpu.memory_space<vmem>>, vector<8x128xf32>,
    return
  }
  func.func @transform_0(%arg0: i32) -> (i32, i32) {
    %c0_i32 = arith.constant 0 : i32
    %c0_i32_0 = arith.constant 0 : i32
    return %arg0, %c0_i32 : i32, i32
  }
  func.func @transform_1(%arg0: i32) -> (i32, i32) {
    %c0_i32 = arith.constant 0 : i32
    %c0_i32_0 = arith.constant 0 : i32
    return %arg0, %c0_i32 : i32, i32
  }
  func.func @transform_2(%arg0: i32) -> (i32, i32) {
    %c0_i32 = arith.constant 0 : i32
    %c0_i32_0 = arith.constant 0 : i32
    %c0_i32_1 = arith.constant 0 : i32
    return %c0_i32, %c0_i32_0 : i32, i32
  }
  func.func @transform_3(%arg0: i32) -> (i32, i32) {
    %c0_i32 = arith.constant 0 : i32
    %c0_i32_0 = arith.constant 0 : i32
    %c0_i32_1 = arith.constant 0 : i32
    return %c0_i32, %c0_i32_0 : i32, i32
  }
  func.func @transform_4(%arg0: i32) -> (i32, i32) {
    %c0_i32 = arith.constant 0 : i32
    %c0_i32_0 = arith.constant 0 : i32
    %c0_i32_1 = arith.constant 0 : i32
    return %c0_i32, %c0_i32_0 : i32, i32
  }
  func.func @transform_5(%arg0: i32) -> (i32, i32) {
    %c0_i32 = arith.constant 0 : i32
    %c0_i32_0 = arith.constant 0 : i32
    return %c0_i32, %arg0 : i32, i32
  }
}

</mosaic_0001>

<llo_original>
// kernel: tpu_custom_call.1
$region0: #{tpu_custom_call.1}
  #allocation0 [shape = 'u32[]', space=smem, size = 0x4, offset = 0x4, fixed_abs, tag = 'smem constant byte address 0x4 - core index']
  #allocation1 [shape = 'u32[72,128]{1,0:T(1,128)}', space=vmem, size = 0x9000, scoped, tag = 'internal scratch']
  %s0 = inlined_call_operand.vmem [shape: f32[128,128], index: 0, kind: input, shape index: {}]
  %s1 = inlined_call_operand.vmem [shape: s32[128,3], index: 1, kind: input, shape index: {}]
  %s2 = inlined_call_operand.vmem [shape: f32[8,128], index: 2, kind: input, shape index: {}]
  %s3 = inlined_call_operand.hbm [shape: bf16[8,128], index: 3, kind: input, shape index: {}]
  %s4 = inlined_call_operand.vmem [shape: f32[8,1], index: 4, kind: input, shape index: {}]
  %s5 = inlined_call_operand.hbm [shape: f32[8,128], index: 5, kind: output, shape index: {}]
  %s6 = sld [smem:[#allocation0]]
  $region34: #{tpu_custom_call.1} parent=0
    _
  %s8 = ssub.s32 1, %s6
  %s9 = scalar_select 0, %s8, %s6
  $region1: #{tpu_custom_call.1} parent=0
    #allocation2 [shape = 'u8[2048]{0}', space=vmem, size = 0x800, scoped, tag = 'input window, operand 3, single buffered']
    #allocation3 [shape = 's32[1]{0}', space=sflag, size = 0x4, scoped, tag = 'scoped memory for tpu_custom_call.1']
    #allocation4 [shape = 's32[1]{0}', space=sflag, size = 0x4, scoped, tag = 'scoped memory for tpu_custom_call.1']
    #allocation5 [shape = 'u8[4096]{0}', space=vmem, size = 0x1000, scoped, tag = 'output window, operand 0, single buffered']
    %10 = vsyncpa [#allocation3], 0
    %11 = vsyncpa [#allocation4], 0
    // Predicated region
    $region2: #{tpu_custom_call.1} parent=1 // pred_check
      _
    $region3: #{tpu_custom_call.1} parent=1 // pred_check_branch
      %13 = sbr.rel (0) target = $region5
    $region4: #{tpu_custom_call.1} parent=1 // pred_region
      _
    $region5: #{tpu_custom_call.1} parent=1 // pred_fallthru
      _
    // Predicated region
    $region6: #{tpu_custom_call.1} parent=1 // pred_check
      _
    $region7: #{tpu_custom_call.1} parent=1 // pred_check_branch
      %15 = sbr.rel (0) target = $region9
    $region8: #{tpu_custom_call.1} parent=1 // pred_region
      _
    $region9: #{tpu_custom_call.1} parent=1 // pred_fallthru
      _
    // Predicated region
    $region10: #{tpu_custom_call.1} parent=1 // pred_check
      _
    $region11: #{tpu_custom_call.1} parent=1 // pred_check_branch
      %17 = sbr.rel (0) target = $region13
    $region12: #{tpu_custom_call.1} parent=1 // pred_region
      _
    $region13: #{tpu_custom_call.1} parent=1 // pred_fallthru
      _
    // Predicated region
    $region14: #{tpu_custom_call.1} parent=1 // pred_check
      _
    $region15: #{tpu_custom_call.1} parent=1 // pred_check_branch
      %19 = sbr.rel (0) target = $region17
    $region16: #{tpu_custom_call.1} parent=1 // pred_region
      %21 = vsyncadd [#allocation3], 0
      %s23 = sshll.u32 %s3, 4
      %s24 = int_to_ptr.hbm [resolvable:$true] %s23
      %s25 = sshll.u32 [#allocation2], 4
      %s26 = int_to_ptr.vmem [resolvable:$true] %s25
      %28 = dma.hbm_to_vmem [thread:$0]  %s24, 64, %s26, [#allocation3]
    $region17: #{tpu_custom_call.1} parent=1 // pred_fallthru
      _
    // Predicated region
    $region18: #{tpu_custom_call.1} parent=1 // pred_check
      _
    $region19: #{tpu_custom_call.1} parent=1 // pred_check_branch
      %30 = sbr.rel (0) target = $region21
    $region20: #{tpu_custom_call.1} parent=1 // pred_region
      _
    $region21: #{tpu_custom_call.1} parent=1 // pred_fallthru
      _
    // Predicated region
    $region22: #{tpu_custom_call.1} parent=1 // pred_check
      _
    $region23: #{tpu_custom_call.1} parent=1 // pred_check_branch
      %32 = sbr.rel (0) target = $region25
    $region24: #{tpu_custom_call.1} parent=1 // pred_region
      %34 = dma.done [#allocation3], 64
    $region25: #{tpu_custom_call.1} parent=1 // pred_fallthru
      _
    %v35 = vld [vmem:[%s1] sm:$0xff]
    %v36 = vld [vmem:[%s1 + $0x8] sm:$0xff]
    %v37 = vld [vmem:[%s1 + $0x10] sm:$0xff]
    %v38 = vld [vmem:[%s1 + $0x18] sm:$0xff]
    %v39 = vld [vmem:[%s1 + $0x20] sm:$0xff]
    %v40 = vld [vmem:[%s1 + $0x28] sm:$0xff]
    %v41 = vld [vmem:[%s1 + $0x30] sm:$0xff]
    %v42 = vld [vmem:[%s1 + $0x38] sm:$0xff]
    %v43 = vld [vmem:[%s1 + $0x40] sm:$0xff]
    %v44 = vld [vmem:[%s1 + $0x48] sm:$0xff]
    %v45 = vld [vmem:[%s1 + $0x50] sm:$0xff]
    %v46 = vld [vmem:[%s1 + $0x58] sm:$0xff]
    %v47 = vld [vmem:[%s1 + $0x60] sm:$0xff]
    %v48 = vld [vmem:[%s1 + $0x68] sm:$0xff]
    %v49 = vld [vmem:[%s1 + $0x70] sm:$0xff]
    %v50 = vld [vmem:[%s1 + $0x78] sm:$0xff]
    %v51 = vlaneseq
    %v52 = vand.u32 %v51, 127
    %53 = vset.pattern.permute.xlu0 0
    %54 = vperm.xlu0 %53, %v35
    %v55 = vpop.permute.xlu0 %54
    %56 = vset.pattern.permute.xlu0 0
    %57 = vperm.xlu0 %56, %v36
    %v58 = vpop.permute.xlu0 %57
    %59 = vset.pattern.permute.xlu0 0
    %60 = vperm.xlu0 %59, %v37
    %v61 = vpop.permute.xlu0 %60
    %62 = vset.pattern.permute.xlu0 0
    %63 = vperm.xlu0 %62, %v38
    %v64 = vpop.permute.xlu0 %63
    %65 = vset.pattern.permute.xlu0 0
    %66 = vperm.xlu0 %65, %v39
    %v67 = vpop.permute.xlu0 %66
    %68 = vset.pattern.permute.xlu0 0
    %69 = vperm.xlu0 %68, %v40
    %v70 = vpop.permute.xlu0 %69
    %71 = vset.pattern.permute.xlu0 0
    %72 = vperm.xlu0 %71, %v41
    %v73 = vpop.permute.xlu0 %72
    %74 = vset.pattern.permute.xlu0 0
    %75 = vperm.xlu0 %74, %v42
    %v76 = vpop.permute.xlu0 %75
    %77 = vset.pattern.permute.xlu0 0
    %78 = vperm.xlu0 %77, %v43
    %v79 = vpop.permute.xlu0 %78
    %80 = vset.pattern.permute.xlu0 0
    %81 = vperm.xlu0 %80, %v44
    %v82 = vpop.permute.xlu0 %81
    %83 = vset.pattern.permute.xlu0 0
    %84 = vperm.xlu0 %83, %v45
    %v85 = vpop.permute.xlu0 %84
    %86 = vset.pattern.permute.xlu0 0
    %87 = vperm.xlu0 %86, %v46
    %v88 = vpop.permute.xlu0 %87
    %89 = vset.pattern.permute.xlu0 0
    %90 = vperm.xlu0 %89, %v47
    %v91 = vpop.permute.xlu0 %90
    %92 = vset.pattern.permute.xlu0 0
    %93 = vperm.xlu0 %92, %v48
    %v94 = vpop.permute.xlu0 %93
    %95 = vset.pattern.permute.xlu0 0
    %96 = vperm.xlu0 %95, %v49
    %v97 = vpop.permute.xlu0 %96
    %98 = vset.pattern.permute.xlu0 0
    %99 = vperm.xlu0 %98, %v50
    %v100 = vpop.permute.xlu0 %99
    %vm101 = vcmp.eq.s32.totalorder %v55, %v52
    %vm102 = vcmp.eq.s32.totalorder %v58, %v52
    %vm103 = vcmp.eq.s32.totalorder %v61, %v52
    %vm104 = vcmp.eq.s32.totalorder %v64, %v52
    %vm105 = vcmp.eq.s32.totalorder %v67, %v52
    %vm106 = vcmp.eq.s32.totalorder %v70, %v52
    %vm107 = vcmp.eq.s32.totalorder %v73, %v52
    %vm108 = vcmp.eq.s32.totalorder %v76, %v52
    %vm109 = vcmp.eq.s32.totalorder %v79, %v52
    %vm110 = vcmp.eq.s32.totalorder %v82, %v52
    %vm111 = vcmp.eq.s32.totalorder %v85, %v52
    %vm112 = vcmp.eq.s32.totalorder %v88, %v52
    %vm113 = vcmp.eq.s32.totalorder %v91, %v52
    %vm114 = vcmp.eq.s32.totalorder %v94, %v52
    %vm115 = vcmp.eq.s32.totalorder %v97, %v52
    %vm116 = vcmp.eq.s32.totalorder %v100, %v52
    %v117 = vsel %vm101, 1, 0
    %v118 = vsel %vm102, 1, 0
    %v119 = vsel %vm103, 1, 0
    %v120 = vsel %vm104, 1, 0
    %v121 = vsel %vm105, 1, 0
    %v122 = vsel %vm106, 1, 0
    %v123 = vsel %vm107, 1, 0
    %v124 = vsel %vm108, 1, 0
    %v125 = vsel %vm109, 1, 0
    %v126 = vsel %vm110, 1, 0
    %v127 = vsel %vm111, 1, 0
    %v128 = vsel %vm112, 1, 0
    %v129 = vsel %vm113, 1, 0
    %v130 = vsel %vm114, 1, 0
    %v131 = vsel %vm115, 1, 0
    %v132 = vsel %vm116, 1, 0
    %133 = vset.pattern.permute.xlu0 1
    %134 = vperm.xlu0 %133, %v35
    %v135 = vpop.permute.xlu0 %134
    %136 = vset.pattern.permute.xlu0 1
    %137 = vperm.xlu0 %136, %v36
    %v138 = vpop.permute.xlu0 %137
    %139 = vset.pattern.permute.xlu0 1
    %140 = vperm.xlu0 %139, %v37
    %v141 = vpop.permute.xlu0 %140
    %142 = vset.pattern.permute.xlu0 1
    %143 = vperm.xlu0 %142, %v38
    %v144 = vpop.permute.xlu0 %143
    %145 = vset.pattern.permute.xlu0 1
    %146 = vperm.xlu0 %145, %v39
    %v147 = vpop.permute.xlu0 %146
    %148 = vset.pattern.permute.xlu0 1
    %149 = vperm.xlu0 %148, %v40
    %v150 = vpop.permute.xlu0 %149
    %151 = vset.pattern.permute.xlu0 1
    %152 = vperm.xlu0 %151, %v41
    %v153 = vpop.permute.xlu0 %152
    %154 = vset.pattern.permute.xlu0 1
    %155 = vperm.xlu0 %154, %v42
    %v156 = vpop.permute.xlu0 %155
    %157 = vset.pattern.permute.xlu0 1
    %158 = vperm.xlu0 %157, %v43
    %v159 = vpop.permute.xlu0 %158
    %160 = vset.pattern.permute.xlu0 1
    %161 = vperm.xlu0 %160, %v44
    %v162 = vpop.permute.xlu0 %161
    %163 = vset.pattern.permute.xlu0 1
    %164 = vperm.xlu0 %163, %v45
    %v165 = vpop.permute.xlu0 %164
    %166 = vset.pattern.permute.xlu0 1
    %167 = vperm.xlu0 %166, %v46
    %v168 = vpop.permute.xlu0 %167
    %169 = vset.pattern.permute.xlu0 1
    %170 = vperm.xlu0 %169, %v47
    %v171 = vpop.permute.xlu0 %170
    %172 = vset.pattern.permute.xlu0 1
    %173 = vperm.xlu0 %172, %v48
    %v174 = vpop.permute.xlu0 %173
    %175 = vset.pattern.permute.xlu0 1
    %176 = vperm.xlu0 %175, %v49
    %v177 = vpop.permute.xlu0 %176
    %178 = vset.pattern.permute.xlu0 1
    %179 = vperm.xlu0 %178, %v50
    %v180 = vpop.permute.xlu0 %179
    %vm181 = vcmp.eq.s32.totalorder %v135, %v52
    %vm182 = vcmp.eq.s32.totalorder %v138, %v52
    %vm183 = vcmp.eq.s32.totalorder %v141, %v52
    %vm184 = vcmp.eq.s32.totalorder %v144, %v52
    %vm185 = vcmp.eq.s32.totalorder %v147, %v52
    %vm186 = vcmp.eq.s32.totalorder %v150, %v52
    %vm187 = vcmp.eq.s32.totalorder %v153, %v52
    %vm188 = vcmp.eq.s32.totalorder %v156, %v52
    %vm189 = vcmp.eq.s32.totalorder %v159, %v52
    %vm190 = vcmp.eq.s32.totalorder %v162, %v52
    %vm191 = vcmp.eq.s32.totalorder %v165, %v52
    %vm192 = vcmp.eq.s32.totalorder %v168, %v52
    %vm193 = vcmp.eq.s32.totalorder %v171, %v52
    %vm194 = vcmp.eq.s32.totalorder %v174, %v52
    %vm195 = vcmp.eq.s32.totalorder %v177, %v52
    %vm196 = vcmp.eq.s32.totalorder %v180, %v52
    %v197 = vsel %vm181, 1, 0
    %v198 = vsel %vm182, 1, 0
    %v199 = vsel %vm183, 1, 0
    %v200 = vsel %vm184, 1, 0
    %v201 = vsel %vm185, 1, 0
    %v202 = vsel %vm186, 1, 0
    %v203 = vsel %vm187, 1, 0
    %v204 = vsel %vm188, 1, 0
    %v205 = vsel %vm189, 1, 0
    %v206 = vsel %vm190, 1, 0
    %v207 = vsel %vm191, 1, 0
    %v208 = vsel %vm192, 1, 0
    %v209 = vsel %vm193, 1, 0
    %v210 = vsel %vm194, 1, 0
    %v211 = vsel %vm195, 1, 0
    %v212 = vsel %vm196, 1, 0
    %v213 = vadd.s32 %v117, %v197
    %v214 = vadd.s32 %v118, %v198
    %v215 = vadd.s32 %v119, %v199
    %v216 = vadd.s32 %v120, %v200
    %v217 = vadd.s32 %v121, %v201
    %v218 = vadd.s32 %v122, %v202
    %v219 = vadd.s32 %v123, %v203
    %v220 = vadd.s32 %v124, %v204
    %v221 = vadd.s32 %v125, %v205
    %v222 = vadd.s32 %v126, %v206
    %v223 = vadd.s32 %v127, %v207
    %v224 = vadd.s32 %v128, %v208
    %v225 = vadd.s32 %v129, %v209
    %v226 = vadd.s32 %v130, %v210
    %v227 = vadd.s32 %v131, %v211
    %v228 = vadd.s32 %v132, %v212
    %229 = vset.pattern.permute.xlu0 2
    %230 = vperm.xlu0 %229, %v35
    %v231 = vpop.permute.xlu0 %230
    %232 = vset.pattern.permute.xlu0 2
    %233 = vperm.xlu0 %232, %v36
    %v234 = vpop.permute.xlu0 %233
    %235 = vset.pattern.permute.xlu0 2
    %236 = vperm.xlu0 %235, %v37
    %v237 = vpop.permute.xlu0 %236
    %238 = vset.pattern.permute.xlu0 2
    %239 = vperm.xlu0 %238, %v38
    %v240 = vpop.permute.xlu0 %239
    %241 = vset.pattern.permute.xlu0 2
    %242 = vperm.xlu0 %241, %v39
    %v243 = vpop.permute.xlu0 %242
    %244 = vset.pattern.permute.xlu0 2
    %245 = vperm.xlu0 %244, %v40
    %v246 = vpop.permute.xlu0 %245
    %247 = vset.pattern.permute.xlu0 2
    %248 = vperm.xlu0 %247, %v41
    %v249 = vpop.permute.xlu0 %248
    %250 = vset.pattern.permute.xlu0 2
    %251 = vperm.xlu0 %250, %v42
    %v252 = vpop.permute.xlu0 %251
    %253 = vset.pattern.permute.xlu0 2
    %254 = vperm.xlu0 %253, %v43
    %v255 = vpop.permute.xlu0 %254
    %256 = vset.pattern.permute.xlu0 2
    %257 = vperm.xlu0 %256, %v44
    %v258 = vpop.permute.xlu0 %257
    %259 = vset.pattern.permute.xlu0 2
    %260 = vperm.xlu0 %259, %v45
    %v261 = vpop.permute.xlu0 %260
    %262 = vset.pattern.permute.xlu0 2
    %263 = vperm.xlu0 %262, %v46
    %v264 = vpop.permute.xlu0 %263
    %265 = vset.pattern.permute.xlu0 2
    %266 = vperm.xlu0 %265, %v47
    %v267 = vpop.permute.xlu0 %266
    %268 = vset.pattern.permute.xlu0 2
    %269 = vperm.xlu0 %268, %v48
    %v270 = vpop.permute.xlu0 %269
    %271 = vset.pattern.permute.xlu0 2
    %272 = vperm.xlu0 %271, %v49
    %v273 = vpop.permute.xlu0 %272
    %274 = vset.pattern.permute.xlu0 2
    %275 = vperm.xlu0 %274, %v50
    %v276 = vpop.permute.xlu0 %275
    %vm277 = vcmp.eq.s32.totalorder %v231, %v52
    %vm278 = vcmp.eq.s32.totalorder %v234, %v52
    %vm279 = vcmp.eq.s32.totalorder %v237, %v52
    %vm280 = vcmp.eq.s32.totalorder %v240, %v52
    %vm281 = vcmp.eq.s32.totalorder %v243, %v52
    %vm282 = vcmp.eq.s32.totalorder %v246, %v52
    %vm283 = vcmp.eq.s32.totalorder %v249, %v52
    %vm284 = vcmp.eq.s32.totalorder %v252, %v52
    %vm285 = vcmp.eq.s32.totalorder %v255, %v52
    %vm286 = vcmp.eq.s32.totalorder %v258, %v52
    %vm287 = vcmp.eq.s32.totalorder %v261, %v52
    %vm288 = vcmp.eq.s32.totalorder %v264, %v52
    %vm289 = vcmp.eq.s32.totalorder %v267, %v52
    %vm290 = vcmp.eq.s32.totalorder %v270, %v52
    %vm291 = vcmp.eq.s32.totalorder %v273, %v52
    %vm292 = vcmp.eq.s32.totalorder %v276, %v52
    %v293 = vsel %vm277, 1, 0
    %v294 = vsel %vm278, 1, 0
    %v295 = vsel %vm279, 1, 0
    %v296 = vsel %vm280, 1, 0
    %v297 = vsel %vm281, 1, 0
    %v298 = vsel %vm282, 1, 0
    %v299 = vsel %vm283, 1, 0
    %v300 = vsel %vm284, 1, 0
    %v301 = vsel %vm285, 1, 0
    %v302 = vsel %vm286, 1, 0
    %v303 = vsel %vm287, 1, 0
    %v304 = vsel %vm288, 1, 0
    %v305 = vsel %vm289, 1, 0
    %v306 = vsel %vm290, 1, 0
    %v307 = vsel %vm291, 1, 0
    %v308 = vsel %vm292, 1, 0
    %v309 = vadd.s32 %v213, %v293
    %v310 = vadd.s32 %v214, %v294
    %v311 = vadd.s32 %v215, %v295
    %v312 = vadd.s32 %v216, %v296
    %v313 = vadd.s32 %v217, %v297
    %v314 = vadd.s32 %v218, %v298
    %v315 = vadd.s32 %v219, %v299
    %v316 = vadd.s32 %v220, %v300
    %v317 = vadd.s32 %v221, %v301
    %v318 = vadd.s32 %v222, %v302
    %v319 = vadd.s32 %v223, %v303
    %v320 = vadd.s32 %v224, %v304
    %v321 = vadd.s32 %v225, %v305
    %v322 = vadd.s32 %v226, %v306
    %v323 = vadd.s32 %v227, %v307
    %v324 = vadd.s32 %v228, %v308
    %v325 = vcvt.s32.f32 %v309
    %v326 = vcvt.s32.f32 %v310
    %v327 = vcvt.s32.f32 %v311
    %v328 = vcvt.s32.f32 %v312
    %v329 = vcvt.s32.f32 %v313
    %v330 = vcvt.s32.f32 %v314
    %v331 = vcvt.s32.f32 %v315
    %v332 = vcvt.s32.f32 %v316
    %v333 = vcvt.s32.f32 %v317
    %v334 = vcvt.s32.f32 %v318
    %v335 = vcvt.s32.f32 %v319
    %v336 = vcvt.s32.f32 %v320
    %v337 = vcvt.s32.f32 %v321
    %v338 = vcvt.s32.f32 %v322
    %v339 = vcvt.s32.f32 %v323
    %v340 = vcvt.s32.f32 %v324
    %v341 = vpack.c.bf16 %v326, %v325
    %v342 = vpack.c.bf16 %v328, %v327
    %v343 = vpack.c.bf16 %v330, %v329
    %v344 = vpack.c.bf16 %v332, %v331
    %v345 = vpack.c.bf16 %v334, %v333
    %v346 = vpack.c.bf16 %v336, %v335
    %v347 = vpack.c.bf16 %v338, %v337
    %v348 = vpack.c.bf16 %v340, %v339
    %v349 = vld [vmem:[%s2] sm:$0xff]
    %v350 = vld [vmem:[%s0] sm:$0xff]
    %v351 = vld [vmem:[%s0 + $0x8] sm:$0xff]
    %v352 = vld [vmem:[%s0 + $0x10] sm:$0xff]
    %v353 = vld [vmem:[%s0 + $0x18] sm:$0xff]
    %v354 = vld [vmem:[%s0 + $0x20] sm:$0xff]
    %v355 = vld [vmem:[%s0 + $0x28] sm:$0xff]
    %v356 = vld [vmem:[%s0 + $0x30] sm:$0xff]
    %v357 = vld [vmem:[%s0 + $0x38] sm:$0xff]
    %v358 = vld [vmem:[%s0 + $0x40] sm:$0xff]
    %v359 = vld [vmem:[%s0 + $0x48] sm:$0xff]
    %v360 = vld [vmem:[%s0 + $0x50] sm:$0xff]
    %v361 = vld [vmem:[%s0 + $0x58] sm:$0xff]
    %v362 = vld [vmem:[%s0 + $0x60] sm:$0xff]
    %v363 = vld [vmem:[%s0 + $0x68] sm:$0xff]
    %v364 = vld [vmem:[%s0 + $0x70] sm:$0xff]
    %v365 = vld [vmem:[%s0 + $0x78] sm:$0xff]
    %v366 = vld [vmem:[#allocation2] sm:$0xf]
    %367 = vmatpush.bf16.xpose.msra.mxu0 %v348
    %368 = vmatpush.bf16.xpose.msra.mxu0 %v347
    %369 = vmatpush.bf16.xpose.msra.mxu0 %v346
    %370 = vmatpush.bf16.xpose.msra.mxu0 %v345
    %371 = vmatpush.bf16.xpose.msra.mxu0 %v344
    %372 = vmatpush.bf16.xpose.msra.mxu0 %v343
    %373 = vmatpush.bf16.xpose.msra.mxu0 %v342
    %374 = vmatpush.bf16.xpose.msra.mxu0 %v341
    %375 = vmatmul.bf16.gmra.mxu0 %v366
    %v376 = vpop.f32.mrf.mxu0
    %v377 = vadd.f32 0.0, %v376
    %v378 = vpop.f32.mrf.mxu0
    %379 = vdwg.mxu0
    %380 = vmatpush.xpose.msra.mxu0 %v365
    %381 = vmatpush.xpose.msra.mxu0 %v364
    %382 = vmatpush.xpose.msra.mxu0 %v363
    %383 = vmatpush.xpose.msra.mxu0 %v362
    %384 = vmatpush.xpose.msra.mxu0 %v361
    %385 = vmatpush.xpose.msra.mxu0 %v360
    %386 = vmatpush.xpose.msra.mxu0 %v359
    %387 = vmatpush.xpose.msra.mxu0 %v358
    %388 = vmatpush.xpose.msra.mxu0 %v357
    %389 = vmatpush.xpose.msra.mxu0 %v356
    %390 = vmatpush.xpose.msra.mxu0 %v355
    %391 = vmatpush.xpose.msra.mxu0 %v354
    %392 = vmatpush.xpose.msra.mxu0 %v353
    %393 = vmatpush.xpose.msra.mxu0 %v352
    %394 = vmatpush.xpose.msra.mxu0 %v351
    %395 = vmatpush.xpose.msra.mxu0 %v350
    %396 = vmatmul.f32.gmra.mxu0 %v349
    %v397 = vpop.f32.mrf.mxu0
    %v398 = vadd.f32 %v377, %v397
    %399 = vdwg.mxu0
    %v400 = vld [vmem:[%s4] sm:$0xff]
    %402 = vset.pattern.permute.xlu0 0
    %403 = vperm.xlu0 %402, %v400
    %v404 = vpop.permute.xlu0 %403
    %v406 = vadd.f32 %v398, %v404
    %v407 = vmax.f32 %v406, -50.0
    %v408 = vmin.f32 %v407, 50.0
    %v409 = vsub.f32 0.0, %v408
    %v410 = vmul.f32 %v409, 1.442695
    %v411 = vpow.pop %v410
    %v412 = vadd.f32 %v411, 1.0
    %v413 = vrcp.pop %v412
    %v414 = vmul.f32 %v412, %v413
    %v415 = vsub.f32 1.0, %v414
    %v416 = vmul.f32 %v413, %v415
    %v417 = vadd.f32 %v413, %v416
    %vm418 = vweird.f32 %v412
    %vm419 = vweird.f32 %v413
    %vm420 = vmor %vm418, %vm419
    %v421 = vsel %vm420, %v413, %v417
    %v422 = vand.u32 2147483647, %v412
    %vm423 = vcmp.eq.f32.partialorder %v422, 8.507059e+37
    %v424 = vand.u32 %v412, 2147483648
    %v425 = vor.u32 1.1754944e-38, %v424
    %v426 = vsel %vm423, %v425, %v421
    %v427 = vmul.f32 1.0, %v426
    %428 = vst [vmem:[#allocation5] sm:$0xff] %v427
    // Predicated region
    $region26: #{tpu_custom_call.1} parent=1 // pred_check
      _
    $region27: #{tpu_custom_call.1} parent=1 // pred_check_branch
      %430 = sbr.rel (0) target = $region29
    $region28: #{tpu_custom_call.1} parent=1 // pred_region
      %432 = vsyncadd [#allocation4], 0
      %s434 = sshll.u32 [#allocation5], 4
      %s435 = int_to_ptr.vmem [resolvable:$true] %s434
      %s436 = sshll.u32 %s5, 4
      %s437 = int_to_ptr.hbm [resolvable:$true] %s436
      %439 = dma.vmem_to_hbm [thread:$0]  %s435, 128, %s437, [#allocation4]
    $region29: #{tpu_custom_call.1} parent=1 // pred_fallthru
      _
    // Predicated region
    $region30: #{tpu_custom_call.1} parent=1 // pred_check
      _
    $region31: #{tpu_custom_call.1} parent=1 // pred_check_branch
      %441 = sbr.rel (0) target = $region33
    $region32: #{tpu_custom_call.1} parent=1 // pred_region
      %443 = dma.done [#allocation4], 128
    $region33: #{tpu_custom_call.1} parent=1 // pred_fallthru
      _
    %444 = vsyncpa [#allocation3], 1
    %445 = vsyncpa [#allocation4], 1

</llo_original>
